<compile_context>
chip_gen: v5e
topology: v5e:2x2
jax: 0.10.0
libtpu: 0.0.40
codegen_flags: <defaults>
</compile_context>

<pallas_src>
import functools

import jax
import jax.numpy as jnp
import numpy as np
from jax import lax
from jax.experimental import pallas as pl
from jax.experimental.pallas import tpu as pltpu


# ----------------------------------------------------------------------------
# Pallas kernel
# ----------------------------------------------------------------------------
def _encoder_kernel(emb_ref,      # (T, Bt, E)   f32 time-major embeddings
                    w_ih_ref,     # (E, 6H)      cols [r_f, z_f, n_f, r_b, z_b, n_b]
                    b_gi_ref,     # (1, 6H)      b_ih (+ b_hh for r,z) folded, f32
                    w_hh_f_ref,   # (H, 3H)
                    w_hh_b_ref,   # (H, 3H)
                    b_hn_ref,     # (1, 2H)      [b_hh_f_n | b_hh_b_n], f32
                    w_fc_ref,     # (2H, H)
                    b_fc_ref,     # (1, H)       f32
                    out_ref,      # (2T, Bt, H)  rows [0,T)=fwd, [T,2T)=bwd
                    enc_ref,      # (1, Bt, H)
                    gi_ref):      # scratch (6T, Bt, H) f32  (gate planes)
    T, Bt, E = emb_ref.shape
    H = w_hh_f_ref.shape[0]
    dot_dtype = w_hh_f_ref.dtype        # f32, or bf16 on the fast path

    # ---- Phase 1: hoisted input projection as ONE large matmul --------------
    emb2d = emb_ref[...].reshape(T * Bt, E).astype(dot_dtype)          # (T*Bt, E)
    gi_all = jnp.dot(emb2d, w_ih_ref[...],
                     preferred_element_type=jnp.float32)               # (T*Bt, 6H)
    gi_all = gi_all + b_gi_ref[...]                                    # fold biases
    # Scatter into six lane-dense (T, Bt, H) gate planes (one-time cost).
    for s in range(6):
        gi_ref[pl.ds(s * T, T)] = gi_all[:, s * H:(s + 1) * H].reshape(T, Bt, H)

    # ---- Phase 2: interleaved forward/backward recurrence -------------------
    w_hh_f = w_hh_f_ref[...]
    w_hh_b = w_hh_b_ref[...]
    b_hn_f = jnp.broadcast_to(b_hn_ref[:, 0:H], (Bt, H))       # hoisted broadcasts
    b_hn_b = jnp.broadcast_to(b_hn_ref[:, H:2 * H], (Bt, H))

    def sigm(x):
        # sigmoid(x) == 0.5*tanh(0.5*x) + 0.5 : one EUP op instead of exp+recip.
        return 0.5 * jnp.tanh(0.5 * x) + 0.5

    def gru_gates(gi_r, gi_z, gi_n, gh, b_hn_g, h_prev):
        # PyTorch GRU cell (gate order r, z, n); b_ih and b_hh_{r,z} already in gi.
        r = sigm(gi_r + gh[:, 0:H])
        z = sigm(gi_z + gh[:, H:2 * H])
        n = jnp.tanh(gi_n + r * (gh[:, 2 * H:3 * H] + b_hn_g))
        return n + z * (h_prev - n)     # == (1-z)*n + z*h_prev

    def rec_body(i, carry):
        h_f, h_b = carry
        t_b = T - 1 - i
        # Two independent MXU matmuls (one per direction) pipeline back-to-back.
        gh_f = jnp.dot(h_f.astype(dot_dtype), w_hh_f,
                       preferred_element_type=jnp.float32)
        gh_b = jnp.dot(h_b.astype(dot_dtype), w_hh_b,
                       preferred_element_type=jnp.float32)
        h_f = gru_gates(gi_ref[i], gi_ref[T + i], gi_ref[2 * T + i],
                        gh_f, b_hn_f, h_f)
        h_b = gru_gates(gi_ref[3 * T + t_b], gi_ref[4 * T + t_b], gi_ref[5 * T + t_b],
                        gh_b, b_hn_b, h_b)
        out_ref[i] = h_f                # lane-dense full (Bt, H) stores
        out_ref[T + t_b] = h_b
        return (h_f, h_b)

    h0 = jnp.zeros((Bt, H), jnp.float32)
    # unroll=1: keep the per-step live set inside the 64-vreg file (no spills).
    h_f, h_b = lax.fori_loop(0, T, rec_body, (h0, h0), unroll=1)

    # ---- Phase 3: encoder_hidden = tanh(Linear(concat(h_fwd, h_bwd))) -------
    h_cat = jnp.concatenate([h_f, h_b], axis=1).astype(dot_dtype)      # (Bt, 2H)
    enc = jnp.tanh(jnp.dot(h_cat, w_fc_ref[...],
                           preferred_element_type=jnp.float32) + b_fc_ref[...])
    enc_ref[0] = enc


# ----------------------------------------------------------------------------
# VMEM budget / batch-tile selection (per-generation)
# ----------------------------------------------------------------------------
def _vmem_budget_bytes():
    cap = 128 * 1024 * 1024
    try:
        cap = int(getattr(pltpu.get_tpu_info(), "vmem_capacity_bytes", cap))
    except Exception:
        pass
    if cap <= 64 * 1024 * 1024:          # v7x-class: leave generous headroom
        return max(cap - 12 * 1024 * 1024, 16 * 1024 * 1024)
    # v5e / v6e: 128 MiB physical; leave headroom for compiler internal scratch.
    return min(cap - 16 * 1024 * 1024, 112 * 1024 * 1024)


def _pick_batch_tile(B, budget, footprint):
    # Largest tile first: full batch, then multiples of 8 that divide B
    # (sublane-alignment rule for partial blocks).
    cands = [B] + [c for c in range(B - (B % 8), 0, -8) if c > 0 and B % c == 0]
    ordered, seen = [], set()
    for c in cands:
        if c not in seen:
            seen.add(c)
            ordered.append(c)
    for c in ordered:
        if footprint(c) <= 0.85 * budget:
            return c
    return ordered[-1]


def _rep_spec(shape):
    n = len(shape)
    return pl.BlockSpec(shape, lambda b, n=n: (0,) * n)


# ----------------------------------------------------------------------------
# Wrapper (parameter packing / glue)
# ----------------------------------------------------------------------------
def encoder_forward(tokens, params, use_bf16=False):
    """tokens: (B, T) int32.  Returns (gru_outputs (B,T,2H), encoder_hidden (1,B,H))."""
    emb_table = params["embedding"]                           # (V, E)
    B, T = tokens.shape
    E = emb_table.shape[1]
    H = params["w_hh_f"].shape[0] // 3
    w_dtype = jnp.bfloat16 if use_bf16 else jnp.float32

    # Embedding gather directly into time-major layout (no activation transpose).
    emb_tm = jnp.take(emb_table, tokens.T, axis=0).astype(jnp.float32)   # (T, B, E)

    def tr(w):
        return jnp.asarray(w, jnp.float32).T

    # Input-projection weights for both directions fused: (E, 6H).
    w_ih = jnp.concatenate([tr(params["w_ih_f"]),
                            tr(params["w_ih_b"])], axis=1).astype(w_dtype)
    w_hh_f = tr(params["w_hh_f"]).astype(w_dtype)             # (H, 3H)
    w_hh_b = tr(params["w_hh_b"]).astype(w_dtype)             # (H, 3H)
    w_fc = tr(params["w_fc"]).astype(w_dtype)                 # (2H, H)

    def fold_bias(b_ih, b_hh):
        # r,z: b_ih + b_hh ; n: b_ih only (b_hh_n stays inside the r*(...) term).
        return jnp.concatenate([b_ih[:2 * H] + b_hh[:2 * H], b_ih[2 * H:]])

    b_gi = jnp.concatenate([fold_bias(params["b_ih_f"], params["b_hh_f"]),
                            fold_bias(params["b_ih_b"], params["b_hh_b"])]
                           ).reshape(1, 6 * H)
    b_hn = jnp.concatenate([params["b_hh_f"][2 * H:],
                            params["b_hh_b"][2 * H:]]).reshape(1, 2 * H)
    b_fc = params["b_fc"].reshape(1, H)

    # --- batch tile sized from the per-generation VMEM budget ---------------
    budget = _vmem_budget_bytes()
    wb = 2 if use_bf16 else 4

    def footprint(bt):
        emb_blk = 2 * T * bt * E * 4                           # double-buffered input
        out_blk = 2 * (2 * T * bt * H + bt * H) * 4            # double-buffered outputs
        scratch = 6 * T * bt * H * 4                           # GI gate planes
        weights = 2 * ((E * 6 * H + 2 * H * 3 * H + 2 * H * H) * wb
                       + (6 * H + 2 * H + H) * 4)
        return emb_blk + out_blk + scratch + weights

    bt = _pick_batch_tile(B, budget, footprint)
    grid = (B // bt,)
    vmem_limit = int(min(budget, max(footprint(bt) * 2 + (4 << 20), 16 << 20)))

    in_specs = [
        pl.BlockSpec((T, bt, E), lambda b: (0, b, 0)),         # embeddings (batch tiled)
        _rep_spec((E, 6 * H)),                                 # w_ih (both directions)
        _rep_spec((1, 6 * H)),                                 # folded gi bias
        _rep_spec((H, 3 * H)),                                 # w_hh forward
        _rep_spec((H, 3 * H)),                                 # w_hh backward
        _rep_spec((1, 2 * H)),                                 # b_hh_n (both dirs)
        _rep_spec((2 * H, H)),                                 # fc weight
        _rep_spec((1, H)),                                     # fc bias
    ]
    out_specs = (
        pl.BlockSpec((2 * T, bt, H), lambda b: (0, b, 0)),     # lane-dense fwd/bwd slab
        pl.BlockSpec((1, bt, H), lambda b: (0, b, 0)),         # encoder hidden
    )

    out_slab, enc_hidden = pl.pallas_call(
        _encoder_kernel,
        out_shape=(jax.ShapeDtypeStruct((2 * T, B, H), jnp.float32),
                   jax.ShapeDtypeStruct((1, B, H), jnp.float32)),
        grid_spec=pltpu.PrefetchScalarGridSpec(
            num_scalar_prefetch=0,
            grid=grid,
            in_specs=in_specs,
            out_specs=out_specs,
            scratch_shapes=[pltpu.VMEM((6 * T, bt, H), jnp.float32)],
        ),
        compiler_params=pltpu.CompilerParams(
            dimension_semantics=("parallel",),
            vmem_limit_bytes=vmem_limit),
    )(emb_tm, w_ih, b_gi, w_hh_f, w_hh_b, b_hn, w_fc, b_fc)

    # (2T, B, H) slab -> batch_first (B, T, 2H); single wrapper transpose.
    fwd_tm = out_slab[:T]                                      # (T, B, H)
    bwd_tm = out_slab[T:]                                      # (T, B, H)
    gru_outputs = jnp.transpose(jnp.concatenate([fwd_tm, bwd_tm], axis=-1),
                                (1, 0, 2))                     # (B, T, 2H)
    return gru_outputs, enc_hidden


# ----------------------------------------------------------------------------
# Pure-JAX reference (mirrors torch.nn.GRU bidirectional semantics)
# ----------------------------------------------------------------------------
def encoder_reference(tokens, params):
    emb = jnp.take(params["embedding"], tokens, axis=0)        # (B, T, E)
    H = params["w_hh_f"].shape[0] // 3

    def cell(x, h, w_ih, w_hh, b_ih, b_hh):
        gi = x @ w_ih.T + b_ih
        gh = h @ w_hh.T + b_hh
        i_r, i_z, i_n = jnp.split(gi, 3, axis=1)
        h_r, h_z, h_n = jnp.split(gh, 3, axis=1)
        r = jax.nn.sigmoid(i_r + h_r)
        z = jax.nn.sigmoid(i_z + h_z)
        n = jnp.tanh(i_n + r * h_n)
        return (1.0 - z) * n + z * h

    def run(xs, w_ih, w_hh, b_ih, b_hh):
        def step(h, x):
            h_new = cell(x, h, w_ih, w_hh, b_ih, b_hh)
            return h_new, h_new
        h0 = jnp.zeros((xs.shape[1], H), jnp.float32)
        h_last, ys = lax.scan(step, h0, xs)
        return ys, h_last

    xs = jnp.transpose(emb, (1, 0, 2))                         # (T, B, E)
    ys_f, h_f = run(xs, params["w_ih_f"], params["w_hh_f"],
                    params["b_ih_f"], params["b_hh_f"])
    ys_b_rev, h_b = run(xs[::-1], params["w_ih_b"], params["w_hh_b"],
                        params["b_ih_b"], params["b_hh_b"])
    ys_b = ys_b_rev[::-1]
    gru_outputs = jnp.transpose(jnp.concatenate([ys_f, ys_b], axis=-1), (1, 0, 2))
    h_cat = jnp.concatenate([h_f, h_b], axis=1)
    enc = jnp.tanh(h_cat @ params["w_fc"].T + params["b_fc"])[None]
    return gru_outputs, enc


# ----------------------------------------------------------------------------
# Deterministic parameter init (PyTorch-default-style uniform ranges)
# ----------------------------------------------------------------------------
def init_params(key, vocab_size, embedding_dim, hidden_dim, padding_idx):
    ks = jax.random.split(key, 12)
    k = 1.0 / np.sqrt(hidden_dim)

    def u(kk, shape):
        return jax.random.uniform(kk, shape, jnp.float32, -k, k)

    emb = jax.random.normal(ks[0], (vocab_size, embedding_dim), jnp.float32)
    emb = emb.at[padding_idx].set(0.0)   # nn.Embedding padding_idx row is zero

    return {
        "embedding": emb,
        "w_ih_f": u(ks[1], (3 * hidden_dim, embedding_dim)),
        "w_hh_f": u(ks[2], (3 * hidden_dim, hidden_dim)),
        "b_ih_f": u(ks[3], (3 * hidden_dim,)),
        "b_hh_f": u(ks[4], (3 * hidden_dim,)),
        "w_ih_b": u(ks[5], (3 * hidden_dim, embedding_dim)),
        "w_hh_b": u(ks[6], (3 * hidden_dim, hidden_dim)),
        "b_ih_b": u(ks[7], (3 * hidden_dim,)),
        "b_hh_b": u(ks[8], (3 * hidden_dim,)),
        "w_fc": u(ks[9], (hidden_dim, 2 * hidden_dim)),
        "b_fc": u(ks[10], (hidden_dim,)),
    }


if __name__ == "__main__":
    VOCAB, EMB, HID, PAD = 50, 16, 32, 0
    B, T = 2, 8

    key = jax.random.PRNGKey(0)
    k_param, k_tok = jax.random.split(key)
    params = init_params(k_param, VOCAB, EMB, HID, PAD)
    tokens = jax.random.randint(k_tok, (B, T), 0, VOCAB, dtype=jnp.int32)

    ref_out, ref_hidden = encoder_reference(tokens, params)

    # Default f32 path: tight parity with the PyTorch-equivalent reference.
    fwd_f32 = jax.jit(functools.partial(encoder_forward, params=params,
                                        use_bf16=False))
    gru_out, enc_hidden = fwd_f32(tokens)
    jax.block_until_ready((gru_out, enc_hidden))
    np.testing.assert_allclose(np.asarray(gru_out), np.asarray(ref_out),
                               rtol=2e-5, atol=2e-5)
    np.testing.assert_allclose(np.asarray(enc_hidden), np.asarray(ref_hidden),
                               rtol=2e-5, atol=2e-5)
    assert gru_out.shape == (B, T, 2 * HID)
    assert enc_hidden.shape == (1, B, HID)

    # Optional bf16-MXU fast path (perf-review optimization); relaxed tolerance.
    # The correctness gate for this script is the f32 run above.
    try:
        fwd_bf16 = jax.jit(functools.partial(encoder_forward, params=params,
                                             use_bf16=True))
        out_b, hid_b = fwd_bf16(tokens)
        jax.block_until_ready((out_b, hid_b))
        np.testing.assert_allclose(np.asarray(out_b), np.asarray(ref_out),
                                   rtol=5e-2, atol=5e-2)
        np.testing.assert_allclose(np.asarray(hid_b), np.asarray(ref_hidden),
                                   rtol=5e-2, atol=5e-2)
    except Exception as e:  # pragma: no cover - optional perf demo only
        print(f"bf16 fast-path check skipped: {type(e).__name__}: {e}")

    print("KERNEL_OK")
</pallas_src>

<mosaic_0001>
module attributes {stable_mosaic.version = 11 : i64} {
  func.func @_encoder_kernel(%arg0: i32, %arg1: memref<8x2x16xf32, #tpu.memory_space<vmem>>, %arg2: memref<16x192xf32, #tpu.memory_space<vmem>>, %arg3: memref<1x192xf32, #tpu.memory_space<vmem>>, %arg4: memref<32x96xf32, #tpu.memory_space<vmem>>, %arg5: memref<32x96xf32, #tpu.memory_space<vmem>>, %arg6: memref<1x64xf32, #tpu.memory_space<vmem>>, %arg7: memref<64x32xf32, #tpu.memory_space<vmem>>, %arg8: memref<1x32xf32, #tpu.memory_space<vmem>>, %arg9: memref<16x2x32xf32, #tpu.memory_space<vmem>>, %arg10: memref<1x2x32xf32, #tpu.memory_space<vmem>>, %arg11: memref<48x2x32xf32, #tpu.memory_space<vmem>>) attributes {dimension_semantics = [#tpu.dimension_semantics<parallel>], iteration_bounds = array<i64: 1>, scalar_prefetch = 0 : i64, scratch_operands = 1 : i64, tpu.core_type = #tpu.core_type<tc>, window_params = [{transform_indices = @transform_0, window_bounds = array<i64: 8, 2, 16>}, {pipeline_mode = #tpu.pipeline_mode<synchronous>, transform_indices = @transform_1, window_bounds = array<i64: 16, 192>}, {pipeline_mode = #tpu.pipeline_mode<synchronous>, transform_indices = @transform_2, window_bounds = array<i64: 1, 192>}, {pipeline_mode = #tpu.pipeline_mode<synchronous>, transform_indices = @transform_3, window_bounds = array<i64: 32, 96>}, {pipeline_mode = #tpu.pipeline_mode<synchronous>, transform_indices = @transform_4, window_bounds = array<i64: 32, 96>}, {pipeline_mode = #tpu.pipeline_mode<synchronous>, transform_indices = @transform_5, window_bounds = array<i64: 1, 64>}, {pipeline_mode = #tpu.pipeline_mode<synchronous>, transform_indices = @transform_6, window_bounds = array<i64: 64, 32>}, {pipeline_mode = #tpu.pipeline_mode<synchronous>, transform_indices = @transform_7, window_bounds = array<i64: 1, 32>}, {transform_indices = @transform_8, window_bounds = array<i64: 16, 2, 32>}, {transform_indices = @transform_9, window_bounds = array<i64: 1, 2, 32>}]} {
    %c0 = arith.constant 0 : index
    %c0_0 = arith.constant 0 : index
    %c0_1 = arith.constant 0 : index
    %0 = vector.load %arg1[%c0, %c0_0, %c0_1] : memref<8x2x16xf32, #tpu.memory_space<vmem>>, vector<8x2x16xf32>
    %1 = vector.shape_cast %0 : vector<8x2x16xf32> to vector<16x16xf32>
    %c0_2 = arith.constant 0 : index
    %c0_3 = arith.constant 0 : index
    %2 = vector.load %arg2[%c0_2, %c0_3] : memref<16x192xf32, #tpu.memory_space<vmem>>, vector<16x192xf32>
    %cst = arith.constant dense<0.000000e+00> : vector<16x192xf32>
    %3 = tpu.matmul %1, %2, %cst {dimension_numbers = #tpu.dot_dimension_numbers<[1], [0], [0], [1], [0, 0, 1, 1], [], []>} : vector<16x16xf32>, vector<16x192xf32>, vector<16x192xf32> -> vector<16x192xf32>
    %c0_4 = arith.constant 0 : index
    %c0_5 = arith.constant 0 : index
    %4 = vector.load %arg3[%c0_4, %c0_5] : memref<1x192xf32, #tpu.memory_space<vmem>>, vector<1x192xf32>
    %5 = vector.broadcast %4 : vector<1x192xf32> to vector<16x192xf32>
    %6 = arith.addf %3, %5 : vector<16x192xf32>
    %7 = vector.extract_strided_slice %6 {offsets = [0, 0], sizes = [16, 32], strides = [1, 1]} : vector<16x192xf32> to vector<16x32xf32>
    %8 = vector.shape_cast %7 : vector<16x32xf32> to vector<8x2x32xf32>
    %c0_6 = arith.constant 0 : index
    %c0_7 = arith.constant 0 : index
    %c0_8 = arith.constant 0 : index
    %9 = vector.load %arg11[%c0_6, %c0_7, %c0_8] : memref<48x2x32xf32, #tpu.memory_space<vmem>>, vector<8x2x32xf32>
    tpu.vector_store %arg11[%c0_6, %c0_7, %c0_8], %8 {strides = array<i32>} : memref<48x2x32xf32, #tpu.memory_space<vmem>>, vector<8x2x32xf32>,
    %10 = vector.extract_strided_slice %6 {offsets = [0, 32], sizes = [16, 32], strides = [1, 1]} : vector<16x192xf32> to vector<16x32xf32>
    %11 = vector.shape_cast %10 : vector<16x32xf32> to vector<8x2x32xf32>
    %c8 = arith.constant 8 : index
    %c0_9 = arith.constant 0 : index
    %c0_10 = arith.constant 0 : index
    %12 = vector.load %arg11[%c8, %c0_9, %c0_10] : memref<48x2x32xf32, #tpu.memory_space<vmem>>, vector<8x2x32xf32>
    tpu.vector_store %arg11[%c8, %c0_9, %c0_10], %11 {strides = array<i32>} : memref<48x2x32xf32, #tpu.memory_space<vmem>>, vector<8x2x32xf32>,
    %13 = vector.extract_strided_slice %6 {offsets = [0, 64], sizes = [16, 32], strides = [1, 1]} : vector<16x192xf32> to vector<16x32xf32>
    %14 = vector.shape_cast %13 : vector<16x32xf32> to vector<8x2x32xf32>
    %c16 = arith.constant 16 : index
    %c0_11 = arith.constant 0 : index
    %c0_12 = arith.constant 0 : index
    %15 = vector.load %arg11[%c16, %c0_11, %c0_12] : memref<48x2x32xf32, #tpu.memory_space<vmem>>, vector<8x2x32xf32>
    tpu.vector_store %arg11[%c16, %c0_11, %c0_12], %14 {strides = array<i32>} : memref<48x2x32xf32, #tpu.memory_space<vmem>>, vector<8x2x32xf32>,
    %16 = vector.extract_strided_slice %6 {offsets = [0, 96], sizes = [16, 32], strides = [1, 1]} : vector<16x192xf32> to vector<16x32xf32>
    %17 = vector.shape_cast %16 : vector<16x32xf32> to vector<8x2x32xf32>
    %c24 = arith.constant 24 : index
    %c0_13 = arith.constant 0 : index
    %c0_14 = arith.constant 0 : index
    %18 = vector.load %arg11[%c24, %c0_13, %c0_14] : memref<48x2x32xf32, #tpu.memory_space<vmem>>, vector<8x2x32xf32>
    tpu.vector_store %arg11[%c24, %c0_13, %c0_14], %17 {strides = array<i32>} : memref<48x2x32xf32, #tpu.memory_space<vmem>>, vector<8x2x32xf32>,
    %19 = vector.extract_strided_slice %6 {offsets = [0, 128], sizes = [16, 32], strides = [1, 1]} : vector<16x192xf32> to vector<16x32xf32>
    %20 = vector.shape_cast %19 : vector<16x32xf32> to vector<8x2x32xf32>
    %c32 = arith.constant 32 : index
    %c0_15 = arith.constant 0 : index
    %c0_16 = arith.constant 0 : index
    %21 = vector.load %arg11[%c32, %c0_15, %c0_16] : memref<48x2x32xf32, #tpu.memory_space<vmem>>, vector<8x2x32xf32>
    tpu.vector_store %arg11[%c32, %c0_15, %c0_16], %20 {strides = array<i32>} : memref<48x2x32xf32, #tpu.memory_space<vmem>>, vector<8x2x32xf32>,
    %22 = vector.extract_strided_slice %6 {offsets = [0, 160], sizes = [16, 32], strides = [1, 1]} : vector<16x192xf32> to vector<16x32xf32>
    %23 = vector.shape_cast %22 : vector<16x32xf32> to vector<8x2x32xf32>
    %c40 = arith.constant 40 : index
    %c0_17 = arith.constant 0 : index
    %c0_18 = arith.constant 0 : index
    %24 = vector.load %arg11[%c40, %c0_17, %c0_18] : memref<48x2x32xf32, #tpu.memory_space<vmem>>, vector<8x2x32xf32>
    tpu.vector_store %arg11[%c40, %c0_17, %c0_18], %23 {strides = array<i32>} : memref<48x2x32xf32, #tpu.memory_space<vmem>>, vector<8x2x32xf32>,
    %c0_19 = arith.constant 0 : index
    %c0_20 = arith.constant 0 : index
    %25 = vector.load %arg4[%c0_19, %c0_20] : memref<32x96xf32, #tpu.memory_space<vmem>>, vector<32x96xf32>
    %c0_21 = arith.constant 0 : index
    %c0_22 = arith.constant 0 : index
    %26 = vector.load %arg5[%c0_21, %c0_22] : memref<32x96xf32, #tpu.memory_space<vmem>>, vector<32x96xf32>
    %c0_23 = arith.constant 0 : index
    %c0_24 = arith.constant 0 : index
    %27 = vector.load %arg6[%c0_23, %c0_24] : memref<1x64xf32, #tpu.memory_space<vmem>>, vector<1x32xf32>
    %28 = vector.shape_cast %27 : vector<1x32xf32> to vector<1x32xf32>
    %29 = vector.broadcast %28 : vector<1x32xf32> to vector<2x32xf32>
    %c0_25 = arith.constant 0 : index
    %c32_26 = arith.constant 32 : index
    %30 = vector.load %arg6[%c0_25, %c32_26] : memref<1x64xf32, #tpu.memory_space<vmem>>, vector<1x32xf32>
    %31 = vector.shape_cast %30 : vector<1x32xf32> to vector<1x32xf32>
    %32 = vector.broadcast %31 : vector<1x32xf32> to vector<2x32xf32>
    %cst_27 = arith.constant 0.000000e+00 : f32
    %33 = vector.broadcast %cst_27 : f32 to vector<2x32xf32>
    %c0_i32 = arith.constant 0 : i32
    %c8_i32 = arith.constant 8 : i32
    %34 = arith.addi %c0_i32, %c8_i32 : i32
    %c1_i32 = arith.constant 1 : i32
    %35:2 = scf.for %arg12 = %c0_i32 to %34 step %c1_i32 iter_args(%arg13 = %33, %arg14 = %33) -> (vector<2x32xf32>, vector<2x32xf32>)  : i32 {
      %c7_i32 = arith.constant 7 : i32
      %46 = arith.subi %c7_i32, %arg12 : i32
      %cst_37 = arith.constant dense<0.000000e+00> : vector<2x96xf32>
      %47 = tpu.matmul %arg13, %25, %cst_37 {dimension_numbers = #tpu.dot_dimension_numbers<[1], [0], [0], [1], [0, 0, 1, 1], [], []>} : vector<2x32xf32>, vector<32x96xf32>, vector<2x96xf32> -> vector<2x96xf32>
      %cst_38 = arith.constant dense<0.000000e+00> : vector<2x96xf32>
      %48 = tpu.matmul %arg14, %26, %cst_38 {dimension_numbers = #tpu.dot_dimension_numbers<[1], [0], [0], [1], [0, 0, 1, 1], [], []>} : vector<2x32xf32>, vector<32x96xf32>, vector<2x96xf32> -> vector<2x96xf32>
      %49 = arith.index_cast %arg12 : i32 to index
      %c0_39 = arith.constant 0 : index
      %c0_40 = arith.constant 0 : index
      %50 = vector.load %arg11[%49, %c0_39, %c0_40] : memref<48x2x32xf32, #tpu.memory_space<vmem>>, vector<1x2x32xf32>
      %51 = vector.shape_cast %50 : vector<1x2x32xf32> to vector<2x32xf32>
      %c8_i32_41 = arith.constant 8 : i32
      %52 = arith.addi %c8_i32_41, %arg12 : i32
      %53 = arith.index_cast %52 : i32 to index
      %c0_42 = arith.constant 0 : index
      %c0_43 = arith.constant 0 : index
      %54 = vector.load %arg11[%53, %c0_42, %c0_43] : memref<48x2x32xf32, #tpu.memory_space<vmem>>, vector<1x2x32xf32>
      %55 = vector.shape_cast %54 : vector<1x2x32xf32> to vector<2x32xf32>
      %c16_i32 = arith.constant 16 : i32
      %56 = arith.addi %c16_i32, %arg12 : i32
      %57 = arith.index_cast %56 : i32 to index
      %c0_44 = arith.constant 0 : index
      %c0_45 = arith.constant 0 : index
      %58 = vector.load %arg11[%57, %c0_44, %c0_45] : memref<48x2x32xf32, #tpu.memory_space<vmem>>, vector<1x2x32xf32>
      %59 = vector.shape_cast %58 : vector<1x2x32xf32> to vector<2x32xf32>
      %60 = vector.extract_strided_slice %47 {offsets = [0, 0], sizes = [2, 32], strides = [1, 1]} : vector<2x96xf32> to vector<2x32xf32>
      %61 = arith.addf %51, %60 : vector<2x32xf32>
      %cst_46 = arith.constant 5.000000e-01 : f32
      %62 = vector.broadcast %cst_46 : f32 to vector<2x32xf32>
      %63 = arith.mulf %62, %61 : vector<2x32xf32>
      %64 = math.tanh %63 : vector<2x32xf32>
      %cst_47 = arith.constant 5.000000e-01 : f32
      %65 = vector.broadcast %cst_47 : f32 to vector<2x32xf32>
      %66 = arith.mulf %65, %64 : vector<2x32xf32>
      %cst_48 = arith.constant 5.000000e-01 : f32
      %67 = vector.broadcast %cst_48 : f32 to vector<2x32xf32>
      %68 = arith.addf %66, %67 : vector<2x32xf32>
      %69 = vector.extract_strided_slice %47 {offsets = [0, 32], sizes = [2, 32], strides = [1, 1]} : vector<2x96xf32> to vector<2x32xf32>
      %70 = arith.addf %55, %69 : vector<2x32xf32>
      %cst_49 = arith.constant 5.000000e-01 : f32
      %71 = vector.broadcast %cst_49 : f32 to vector<2x32xf32>
      %72 = arith.mulf %71, %70 : vector<2x32xf32>
      %73 = math.tanh %72 : vector<2x32xf32>
      %cst_50 = arith.constant 5.000000e-01 : f32
      %74 = vector.broadcast %cst_50 : f32 to vector<2x32xf32>
      %75 = arith.mulf %74, %73 : vector<2x32xf32>
      %cst_51 = arith.constant 5.000000e-01 : f32
      %76 = vector.broadcast %cst_51 : f32 to vector<2x32xf32>
      %77 = arith.addf %75, %76 : vector<2x32xf32>
      %78 = vector.extract_strided_slice %47 {offsets = [0, 64], sizes = [2, 32], strides = [1, 1]} : vector<2x96xf32> to vector<2x32xf32>
      %79 = arith.addf %78, %29 : vector<2x32xf32>
      %80 = arith.mulf %68, %79 : vector<2x32xf32>
      %81 = arith.addf %59, %80 : vector<2x32xf32>
      %82 = math.tanh %81 : vector<2x32xf32>
      %83 = arith.subf %arg13, %82 : vector<2x32xf32>
      %84 = arith.mulf %77, %83 : vector<2x32xf32>
      %85 = arith.addf %82, %84 : vector<2x32xf32>
      %c24_i32 = arith.constant 24 : i32
      %86 = arith.addi %c24_i32, %46 : i32
      %87 = arith.index_cast %86 : i32 to index
      %c0_52 = arith.constant 0 : index
      %c0_53 = arith.constant 0 : index
      %88 = vector.load %arg11[%87, %c0_52, %c0_53] : memref<48x2x32xf32, #tpu.memory_space<vmem>>, vector<1x2x32xf32>
      %89 = vector.shape_cast %88 : vector<1x2x32xf32> to vector<2x32xf32>
      %c32_i32 = arith.constant 32 : i32
      %90 = arith.addi %c32_i32, %46 : i32
      %91 = arith.index_cast %90 : i32 to index
      %c0_54 = arith.constant 0 : index
      %c0_55 = arith.constant 0 : index
      %92 = vector.load %arg11[%91, %c0_54, %c0_55] : memref<48x2x32xf32, #tpu.memory_space<vmem>>, vector<1x2x32xf32>
      %93 = vector.shape_cast %92 : vector<1x2x32xf32> to vector<2x32xf32>
      %c40_i32 = arith.constant 40 : i32
      %94 = arith.addi %c40_i32, %46 : i32
      %95 = arith.index_cast %94 : i32 to index
      %c0_56 = arith.constant 0 : index
      %c0_57 = arith.constant 0 : index
      %96 = vector.load %arg11[%95, %c0_56, %c0_57] : memref<48x2x32xf32, #tpu.memory_space<vmem>>, vector<1x2x32xf32>
      %97 = vector.shape_cast %96 : vector<1x2x32xf32> to vector<2x32xf32>
      %98 = vector.extract_strided_slice %48 {offsets = [0, 0], sizes = [2, 32], strides = [1, 1]} : vector<2x96xf32> to vector<2x32xf32>
      %99 = arith.addf %89, %98 : vector<2x32xf32>
      %cst_58 = arith.constant 5.000000e-01 : f32
      %100 = vector.broadcast %cst_58 : f32 to vector<2x32xf32>
      %101 = arith.mulf %100, %99 : vector<2x32xf32>
      %102 = math.tanh %101 : vector<2x32xf32>
      %cst_59 = arith.constant 5.000000e-01 : f32
      %103 = vector.broadcast %cst_59 : f32 to vector<2x32xf32>
      %104 = arith.mulf %103, %102 : vector<2x32xf32>
      %cst_60 = arith.constant 5.000000e-01 : f32
      %105 = vector.broadcast %cst_60 : f32 to vector<2x32xf32>
      %106 = arith.addf %104, %105 : vector<2x32xf32>
      %107 = vector.extract_strided_slice %48 {offsets = [0, 32], sizes = [2, 32], strides = [1, 1]} : vector<2x96xf32> to vector<2x32xf32>
      %108 = arith.addf %93, %107 : vector<2x32xf32>
      %cst_61 = arith.constant 5.000000e-01 : f32
      %109 = vector.broadcast %cst_61 : f32 to vector<2x32xf32>
      %110 = arith.mulf %109, %108 : vector<2x32xf32>
      %111 = math.tanh %110 : vector<2x32xf32>
      %cst_62 = arith.constant 5.000000e-01 : f32
      %112 = vector.broadcast %cst_62 : f32 to vector<2x32xf32>
      %113 = arith.mulf %112, %111 : vector<2x32xf32>
      %cst_63 = arith.constant 5.000000e-01 : f32
      %114 = vector.broadcast %cst_63 : f32 to vector<2x32xf32>
      %115 = arith.addf %113, %114 : vector<2x32xf32>
      %116 = vector.extract_strided_slice %48 {offsets = [0, 64], sizes = [2, 32], strides = [1, 1]} : vector<2x96xf32> to vector<2x32xf32>
      %117 = arith.addf %116, %32 : vector<2x32xf32>
      %118 = arith.mulf %106, %117 : vector<2x32xf32>
      %119 = arith.addf %97, %118 : vector<2x32xf32>
      %120 = math.tanh %119 : vector<2x32xf32>
      %121 = arith.subf %arg14, %120 : vector<2x32xf32>
      %122 = arith.mulf %115, %121 : vector<2x32xf32>
      %123 = arith.addf %120, %122 : vector<2x32xf32>
      %124 = arith.index_cast %arg12 : i32 to index
      %c0_64 = arith.constant 0 : index
      %c0_65 = arith.constant 0 : index
      %125 = vector.load %arg9[%124, %c0_64, %c0_65] : memref<16x2x32xf32, #tpu.memory_space<vmem>>, vector<1x2x32xf32>
      %126 = vector.shape_cast %125 : vector<1x2x32xf32> to vector<2x32xf32>
      %127 = vector.shape_cast %85 : vector<2x32xf32> to vector<1x2x32xf32>
      tpu.vector_store %arg9[%124, %c0_64, %c0_65], %127 {strides = array<i32>} : memref<16x2x32xf32, #tpu.memory_space<vmem>>, vector<1x2x32xf32>,
      %c8_i32_66 = arith.constant 8 : i32
      %128 = arith.addi %c8_i32_66, %46 : i32
      %129 = arith.index_cast %128 : i32 to index
      %c0_67 = arith.constant 0 : index
      %c0_68 = arith.constant 0 : index
      %130 = vector.load %arg9[%129, %c0_67, %c0_68] : memref<16x2x32xf32, #tpu.memory_space<vmem>>, vector<1x2x32xf32>
      %131 = vector.shape_cast %130 : vector<1x2x32xf32> to vector<2x32xf32>
      %132 = vector.shape_cast %123 : vector<2x32xf32> to vector<1x2x32xf32>
      tpu.vector_store %arg9[%129, %c0_67, %c0_68], %132 {strides = array<i32>} : memref<16x2x32xf32, #tpu.memory_space<vmem>>, vector<1x2x32xf32>,
      scf.yield %85, %123 : vector<2x32xf32>, vector<2x32xf32>
    }
    %c8_i32_28 = arith.constant 8 : i32
    %36 = tpu.concatenate %35#0, %35#1 in 1 : vector<2x32xf32>, vector<2x32xf32> -> vector<2x64xf32>
    %c0_29 = arith.constant 0 : index
    %c0_30 = arith.constant 0 : index
    %37 = vector.load %arg7[%c0_29, %c0_30] : memref<64x32xf32, #tpu.memory_space<vmem>>, vector<64x32xf32>
    %cst_31 = arith.constant dense<0.000000e+00> : vector<2x32xf32>
    %38 = tpu.matmul %36, %37, %cst_31 {dimension_numbers = #tpu.dot_dimension_numbers<[1], [0], [0], [1], [0, 0, 1, 1], [], []>} : vector<2x64xf32>, vector<64x32xf32>, vector<2x32xf32> -> vector<2x32xf32>
    %c0_32 = arith.constant 0 : index
    %c0_33 = arith.constant 0 : index
    %39 = vector.load %arg8[%c0_32, %c0_33] : memref<1x32xf32, #tpu.memory_space<vmem>>, vector<1x32xf32>
    %40 = vector.broadcast %39 : vector<1x32xf32> to vector<2x32xf32>
    %41 = arith.addf %38, %40 : vector<2x32xf32>
    %42 = math.tanh %41 : vector<2x32xf32>
    %c0_34 = arith.constant 0 : index
    %c0_35 = arith.constant 0 : index
    %c0_36 = arith.constant 0 : index
    %43 = vector.load %arg10[%c0_34, %c0_35, %c0_36] : memref<1x2x32xf32, #tpu.memory_space<vmem>>, vector<1x2x32xf32>
    %44 = vector.shape_cast %43 : vector<1x2x32xf32> to vector<2x32xf32>
    %45 = vector.shape_cast %42 : vector<2x32xf32> to vector<1x2x32xf32>
    tpu.vector_store %arg10[%c0_34, %c0_35, %c0_36], %45 {strides = array<i32>} : memref<1x2x32xf32, #tpu.memory_space<vmem>>, vector<1x2x32xf32>,
    return
  }
  func.func @transform_0(%arg0: i32) -> (i32, i32, i32) {
    %c0_i32 = arith.constant 0 : i32
    %c0_i32_0 = arith.constant 0 : i32
    %c0_i32_1 = arith.constant 0 : i32
    return %c0_i32, %arg0, %c0_i32_0 : i32, i32, i32
  }
  func.func @transform_1(%arg0: i32) -> (i32, i32) {
    %c0_i32 = arith.constant 0 : i32
    %c0_i32_0 = arith.constant 0 : i32
    %c0_i32_1 = arith.constant 0 : i32
    return %c0_i32, %c0_i32_0 : i32, i32
  }
  func.func @transform_2(%arg0: i32) -> (i32, i32) {
    %c0_i32 = arith.constant 0 : i32
    %c0_i32_0 = arith.constant 0 : i32
    %c0_i32_1 = arith.constant 0 : i32
    return %c0_i32, %c0_i32_0 : i32, i32
  }
  func.func @transform_3(%arg0: i32) -> (i32, i32) {
    %c0_i32 = arith.constant 0 : i32
    %c0_i32_0 = arith.constant 0 : i32
    %c0_i32_1 = arith.constant 0 : i32
    return %c0_i32, %c0_i32_0 : i32, i32
  }
  func.func @transform_4(%arg0: i32) -> (i32, i32) {
    %c0_i32 = arith.constant 0 : i32
    %c0_i32_0 = arith.constant 0 : i32
    %c0_i32_1 = arith.constant 0 : i32
    return %c0_i32, %c0_i32_0 : i32, i32
  }
  func.func @transform_5(%arg0: i32) -> (i32, i32) {
    %c0_i32 = arith.constant 0 : i32
    %c0_i32_0 = arith.constant 0 : i32
    %c0_i32_1 = arith.constant 0 : i32
    return %c0_i32, %c0_i32_0 : i32, i32
  }
  func.func @transform_6(%arg0: i32) -> (i32, i32) {
    %c0_i32 = arith.constant 0 : i32
    %c0_i32_0 = arith.constant 0 : i32
    %c0_i32_1 = arith.constant 0 : i32
    return %c0_i32, %c0_i32_0 : i32, i32
  }
  func.func @transform_7(%arg0: i32) -> (i32, i32) {
    %c0_i32 = arith.constant 0 : i32
    %c0_i32_0 = arith.constant 0 : i32
    %c0_i32_1 = arith.constant 0 : i32
    return %c0_i32, %c0_i32_0 : i32, i32
  }
  func.func @transform_8(%arg0: i32) -> (i32, i32, i32) {
    %c0_i32 = arith.constant 0 : i32
    %c0_i32_0 = arith.constant 0 : i32
    %c0_i32_1 = arith.constant 0 : i32
    return %c0_i32, %arg0, %c0_i32_0 : i32, i32, i32
  }
  func.func @transform_9(%arg0: i32) -> (i32, i32, i32) {
    %c0_i32 = arith.constant 0 : i32
    %c0_i32_0 = arith.constant 0 : i32
    %c0_i32_1 = arith.constant 0 : i32
    return %c0_i32, %arg0, %c0_i32_0 : i32, i32, i32
  }
}

</mosaic_0001>

<llo_original>
// kernel: encoder_forward.1
$region0: #{encoder_forward.1}
  #allocation0 [shape = 'u32[]', space=smem, size = 0x4, offset = 0x4, fixed_abs, tag = 'smem constant byte address 0x4 - core index']
  #allocation1 [shape = 'u32[72,128]{1,0:T(1,128)}', space=vmem, size = 0x9000, scoped, tag = 'internal scratch']
  #allocation2 [shape = 'f32[48,2,32]{2,1,0:T(2,128)}', space=vmem, size = 0xc000, scoped, tag = 'scratch operand']
  %s0 = inlined_call_operand.vmem [shape: f32[8,2,16], index: 0, kind: input, shape index: {}]
  %s1 = inlined_call_operand.vmem [shape: f32[16,192], index: 1, kind: input, shape index: {}]
  %s2 = inlined_call_operand.vmem [shape: f32[1,192], index: 2, kind: input, shape index: {}]
  %s3 = inlined_call_operand.vmem [shape: f32[32,96], index: 3, kind: input, shape index: {}]
  %s4 = inlined_call_operand.vmem [shape: f32[32,96], index: 4, kind: input, shape index: {}]
  %s5 = inlined_call_operand.vmem [shape: f32[1,64], index: 5, kind: input, shape index: {}]
  %s6 = inlined_call_operand.vmem [shape: f32[64,32], index: 6, kind: input, shape index: {}]
  %s7 = inlined_call_operand.vmem [shape: f32[1,32], index: 7, kind: input, shape index: {}]
  %s8 = inlined_call_operand.vmem [shape: f32[16,2,32], index: 8, kind: output, shape index: {0}]
  %s9 = inlined_call_operand.hbm [shape: f32[1,2,32], index: 9, kind: output, shape index: {1}]
  %10 = xla_tuple %s8, %s9
  %s11 = sld [smem:[#allocation0]]
  $region57: #{encoder_forward.1} parent=0
    _
  %s13 = ssub.s32 1, %s11
  %s14 = scalar_select 0, %s13, %s11
  $region1: #{encoder_forward.1} parent=0
    #allocation3 [shape = 'u8[1024]{0}', space=vmem, size = 0x400, scoped, tag = 'output window, operand 1, single buffered']
    #allocation4 [shape = 's32[1]{0}', space=sflag, size = 0x4, scoped, tag = 'scoped memory for encoder_forward.1']
    %15 = vsyncpa [#allocation4], 0
    // Predicated region
    $region2: #{encoder_forward.1} parent=1 // pred_check
      _
    $region3: #{encoder_forward.1} parent=1 // pred_check_branch
      %17 = sbr.rel (0) target = $region5
    $region4: #{encoder_forward.1} parent=1 // pred_region
      _
    $region5: #{encoder_forward.1} parent=1 // pred_fallthru
      _
    // Predicated region
    $region6: #{encoder_forward.1} parent=1 // pred_check
      _
    $region7: #{encoder_forward.1} parent=1 // pred_check_branch
      %19 = sbr.rel (0) target = $region9
    $region8: #{encoder_forward.1} parent=1 // pred_region
      _
    $region9: #{encoder_forward.1} parent=1 // pred_fallthru
      _
    // Predicated region
    $region10: #{encoder_forward.1} parent=1 // pred_check
      _
    $region11: #{encoder_forward.1} parent=1 // pred_check_branch
      %21 = sbr.rel (0) target = $region13
    $region12: #{encoder_forward.1} parent=1 // pred_region
      _
    $region13: #{encoder_forward.1} parent=1 // pred_fallthru
      _
    // Predicated region
    $region14: #{encoder_forward.1} parent=1 // pred_check
      _
    $region15: #{encoder_forward.1} parent=1 // pred_check_branch
      %23 = sbr.rel (0) target = $region17
    $region16: #{encoder_forward.1} parent=1 // pred_region
      _
    $region17: #{encoder_forward.1} parent=1 // pred_fallthru
      _
    // Predicated region
    $region18: #{encoder_forward.1} parent=1 // pred_check
      _
    $region19: #{encoder_forward.1} parent=1 // pred_check_branch
      %25 = sbr.rel (0) target = $region21
    $region20: #{encoder_forward.1} parent=1 // pred_region
      _
    $region21: #{encoder_forward.1} parent=1 // pred_fallthru
      _
    // Predicated region
    $region22: #{encoder_forward.1} parent=1 // pred_check
      _
    $region23: #{encoder_forward.1} parent=1 // pred_check_branch
      %27 = sbr.rel (0) target = $region25
    $region24: #{encoder_forward.1} parent=1 // pred_region
      _
    $region25: #{encoder_forward.1} parent=1 // pred_fallthru
      _
    // Predicated region
    $region26: #{encoder_forward.1} parent=1 // pred_check
      _
    $region27: #{encoder_forward.1} parent=1 // pred_check_branch
      %29 = sbr.rel (0) target = $region29
    $region28: #{encoder_forward.1} parent=1 // pred_region
      _
    $region29: #{encoder_forward.1} parent=1 // pred_fallthru
      _
    // Predicated region
    $region30: #{encoder_forward.1} parent=1 // pred_check
      _
    $region31: #{encoder_forward.1} parent=1 // pred_check_branch
      %31 = sbr.rel (0) target = $region33
    $region32: #{encoder_forward.1} parent=1 // pred_region
      _
    $region33: #{encoder_forward.1} parent=1 // pred_fallthru
      _
    %v32 = vld [vmem:[%s0] sm:$0x3]
    %v33 = vld [vmem:[%s0 + $0x2] sm:$0x3]
    %v34 = vld [vmem:[%s0 + $0x4] sm:$0x3]
    %v35 = vld [vmem:[%s0 + $0x6] sm:$0x3]
    %v36 = vld [vmem:[%s0 + $0x8] sm:$0x3]
    %v37 = vld [vmem:[%s0 + $0xa] sm:$0x3]
    %v38 = vld [vmem:[%s0 + $0xc] sm:$0x3]
    %v39 = vld [vmem:[%s0 + $0xe] sm:$0x3]
    %v40 = vld [vmem:[%s1] sm:$0xff]
    %v41 = vld [vmem:[%s1 + $0x8] sm:$0xff]
    %v42 = vld [vmem:[%s1 + $0x10] sm:$0xff]
    %v43 = vld [vmem:[%s1 + $0x18] sm:$0xff]
    %v44 = vld [vmem:[%s2] sm:$0x3]
    %v46 = vperm.slane %v44, 0
    %v47 = vperm.slane %v44, 1
    %58 = vst [vmem:[#allocation1] ss:$4 sm:$0xff] %v32
    %s59 = scalar_lea.vmem [#allocation1], 1
    %60 = vst [vmem:[%s59] ss:$4 sm:$0xff] %v33
    %s61 = scalar_lea.vmem [#allocation1], 2
    %62 = vst [vmem:[%s61] ss:$4 sm:$0xff] %v34
    %s63 = scalar_lea.vmem [#allocation1], 3
    %64 = vst [vmem:[%s63] ss:$4 sm:$0xff] %v35
    %s65 = scalar_lea.vmem [#allocation1], 32
    %66 = vst [vmem:[%s65] ss:$4 sm:$0xff] %v36
    %s67 = scalar_lea.vmem [#allocation1], 33
    %68 = vst [vmem:[%s67] ss:$4 sm:$0xff] %v37
    %s69 = scalar_lea.vmem [#allocation1], 34
    %70 = vst [vmem:[%s69] ss:$4 sm:$0xff] %v38
    %s71 = scalar_lea.vmem [#allocation1], 35
    %72 = vst [vmem:[%s71] ss:$4 sm:$0xff] %v39
    %v73 = vld.sshfl [vmem:[#allocation1] sm:$0xff pattern:$0x73625140]
    %v74 = vld.sshfl [vmem:[#allocation1 + $0x20] sm:$0xff pattern:$0x73625140]
    %vm75 = vcmask 130048
    %v76 = vsel %vm75, %v73, 0
    %v78 = vsel %vm75, %v74, 0
    %80 = vmatpush.msra.mxu0 0.0
    %81 = vmatpush.msra.mxu0 0.0
    %82 = vmatpush.msra.mxu0 0.0
    %83 = vmatpush.msra.mxu0 0.0
    %84 = vmatpush.msra.mxu0 0.0
    %85 = vmatpush.msra.mxu0 0.0
    %86 = vmatpush.msra.mxu0 0.0
    %87 = vmatpush.msra.mxu0 0.0
    %88 = vmatpush.msra.mxu0 0.0
    %89 = vmatpush.msra.mxu0 0.0
    %90 = vmatpush.msra.mxu0 0.0
    %91 = vmatpush.msra.mxu0 0.0
    %92 = vmatpush.msra.mxu0 0.0
    %93 = vmatpush.msra.mxu0 0.0
    %94 = vmatpush.msra.mxu0 %v42
    %95 = vmatpush.msra.mxu0 %v40
    %96 = vmatmul.f32.gmra.mxu0 %v76
    %v97 = vpop.f32.mrf.mxu0
    %v98 = vadd.f32 %v46, %v97
    %99 = vmatmul.f32.gmra.mxu0 %v78
    %v100 = vpop.f32.mrf.mxu0
    %v101 = vadd.f32 %v46, %v100
    %102 = vdwg.mxu0
    %103 = vmatpush.msra.mxu0 0.0
    %104 = vmatpush.msra.mxu0 0.0
    %105 = vmatpush.msra.mxu0 0.0
    %106 = vmatpush.msra.mxu0 0.0
    %107 = vmatpush.msra.mxu0 0.0
    %108 = vmatpush.msra.mxu0 0.0
    %109 = vmatpush.msra.mxu0 0.0
    %110 = vmatpush.msra.mxu0 0.0
    %111 = vmatpush.msra.mxu0 0.0
    %112 = vmatpush.msra.mxu0 0.0
    %113 = vmatpush.msra.mxu0 0.0
    %114 = vmatpush.msra.mxu0 0.0
    %115 = vmatpush.msra.mxu0 0.0
    %116 = vmatpush.msra.mxu0 0.0
    %117 = vmatpush.msra.mxu0 %v43
    %118 = vmatpush.msra.mxu0 %v41
    %119 = vmatmul.f32.gmra.mxu0 %v76
    %v120 = vpop.f32.mrf.mxu0
    %v121 = vadd.f32 %v47, %v120
    %122 = vmatmul.f32.gmra.mxu0 %v78
    %v123 = vpop.f32.mrf.mxu0
    %v124 = vadd.f32 %v47, %v123
    %125 = vdwg.mxu0
    %v128 = vrot.slane %v98, 2
    %v129 = vrot.slane %v98, 4
    %v130 = vrot.slane %v98, 6
    %v131 = vrot.slane %v101, 2
    %v132 = vrot.slane %v101, 4
    %v133 = vrot.slane %v101, 6
    %vm140 = vcmask 254976
    %141 = vst.msk [vmem:[#allocation2] sm:$0x3] %vm140, %v98
    %142 = vst.msk [vmem:[#allocation2 + $0x2] sm:$0x3] %vm140, %v128
    %143 = vst.msk [vmem:[#allocation2 + $0x4] sm:$0x3] %vm140, %v129
    %144 = vst.msk [vmem:[#allocation2 + $0x6] sm:$0x3] %vm140, %v130
    %145 = vst.msk [vmem:[#allocation2 + $0x8] sm:$0x3] %vm140, %v101
    %146 = vst.msk [vmem:[#allocation2 + $0xa] sm:$0x3] %vm140, %v131
    %147 = vst.msk [vmem:[#allocation2 + $0xc] sm:$0x3] %vm140, %v132
    %148 = vst.msk [vmem:[#allocation2 + $0xe] sm:$0x3] %vm140, %v133
    %149 = vst [vmem:[#allocation1] ss:$4 sm:$0xff] %v98
    %v150 = vld.sshfl [vmem:[#allocation1] sm:$0xff pattern:$0x73625140]
    %s151 = scalar_lea.vmem [#allocation1], 32
    %152 = vst [vmem:[%s151] ss:$4 sm:$0xff] %v128
    %v153 = vld.sshfl [vmem:[#allocation1 + $0x20] sm:$0xff pattern:$0x73625140]
    %154 = vst [vmem:[#allocation1] ss:$4 sm:$0xff] %v129
    %v155 = vld.sshfl [vmem:[#allocation1] sm:$0xff pattern:$0x73625140]
    %156 = vst [vmem:[%s151] ss:$4 sm:$0xff] %v130
    %v157 = vld.sshfl [vmem:[#allocation1 + $0x20] sm:$0xff pattern:$0x73625140]
    %158 = vst [vmem:[#allocation1] ss:$4 sm:$0xff] %v101
    %v159 = vld.sshfl [vmem:[#allocation1] sm:$0xff pattern:$0x73625140]
    %160 = vst [vmem:[%s151] ss:$4 sm:$0xff] %v131
    %v161 = vld.sshfl [vmem:[#allocation1 + $0x20] sm:$0xff pattern:$0x73625140]
    %162 = vst [vmem:[#allocation1] ss:$4 sm:$0xff] %v132
    %v163 = vld.sshfl [vmem:[#allocation1] sm:$0xff pattern:$0x73625140]
    %164 = vst [vmem:[%s151] ss:$4 sm:$0xff] %v133
    %v165 = vld.sshfl [vmem:[#allocation1 + $0x20] sm:$0xff pattern:$0x73625140]
    %166 = vrot.lane.b32.xlu0 %v150, 96
    %v167 = vpop.permute.xlu0 %166
    %168 = vrot.lane.b32.xlu0 %v153, 96
    %v169 = vpop.permute.xlu0 %168
    %170 = vrot.lane.b32.xlu0 %v155, 96
    %v171 = vpop.permute.xlu0 %170
    %172 = vrot.lane.b32.xlu0 %v157, 96
    %v173 = vpop.permute.xlu0 %172
    %174 = vrot.lane.b32.xlu0 %v159, 96
    %v175 = vpop.permute.xlu0 %174
    %176 = vrot.lane.b32.xlu0 %v161, 96
    %v177 = vpop.permute.xlu0 %176
    %178 = vrot.lane.b32.xlu0 %v163, 96
    %v179 = vpop.permute.xlu0 %178
    %180 = vrot.lane.b32.xlu0 %v165, 96
    %v181 = vpop.permute.xlu0 %180
    %s190 = scalar_lea.vmem [#allocation2], 16
    %191 = vst.msk [vmem:[%s190] sm:$0x3] %vm140, %v167
    %192 = vst.msk [vmem:[%s190 + $0x2] sm:$0x3] %vm140, %v169
    %193 = vst.msk [vmem:[%s190 + $0x4] sm:$0x3] %vm140, %v171
    %194 = vst.msk [vmem:[%s190 + $0x6] sm:$0x3] %vm140, %v173
    %195 = vst.msk [vmem:[%s190 + $0x8] sm:$0x3] %vm140, %v175
    %196 = vst.msk [vmem:[%s190 + $0xa] sm:$0x3] %vm140, %v177
    %197 = vst.msk [vmem:[%s190 + $0xc] sm:$0x3] %vm140, %v179
    %198 = vst.msk [vmem:[%s190 + $0xe] sm:$0x3] %vm140, %v181
    %199 = vst [vmem:[#allocation1] ss:$4 sm:$0xff] %v98
    %v200 = vld.sshfl [vmem:[#allocation1] sm:$0xff pattern:$0x73625140]
    %s201 = scalar_lea.vmem [#allocation1], 32
    %202 = vst [vmem:[%s201] ss:$4 sm:$0xff] %v128
    %v203 = vld.sshfl [vmem:[#allocation1 + $0x20] sm:$0xff pattern:$0x73625140]
    %204 = vst [vmem:[#allocation1] ss:$4 sm:$0xff] %v129
    %v205 = vld.sshfl [vmem:[#allocation1] sm:$0xff pattern:$0x73625140]
    %206 = vst [vmem:[%s201] ss:$4 sm:$0xff] %v130
    %v207 = vld.sshfl [vmem:[#allocation1 + $0x20] sm:$0xff pattern:$0x73625140]
    %208 = vst [vmem:[#allocation1] ss:$4 sm:$0xff] %v101
    %v209 = vld.sshfl [vmem:[#allocation1] sm:$0xff pattern:$0x73625140]
    %210 = vst [vmem:[%s201] ss:$4 sm:$0xff] %v131
    %v211 = vld.sshfl [vmem:[#allocation1 + $0x20] sm:$0xff pattern:$0x73625140]
    %212 = vst [vmem:[#allocation1] ss:$4 sm:$0xff] %v132
    %v213 = vld.sshfl [vmem:[#allocation1] sm:$0xff pattern:$0x73625140]
    %214 = vst [vmem:[%s201] ss:$4 sm:$0xff] %v133
    %v215 = vld.sshfl [vmem:[#allocation1 + $0x20] sm:$0xff pattern:$0x73625140]
    %216 = vrot.lane.b32.xlu0 %v200, 64
    %v217 = vpop.permute.xlu0 %216
    %218 = vrot.lane.b32.xlu0 %v203, 64
    %v219 = vpop.permute.xlu0 %218
    %220 = vrot.lane.b32.xlu0 %v205, 64
    %v221 = vpop.permute.xlu0 %220
    %222 = vrot.lane.b32.xlu0 %v207, 64
    %v223 = vpop.permute.xlu0 %222
    %224 = vrot.lane.b32.xlu0 %v209, 64
    %v225 = vpop.permute.xlu0 %224
    %226 = vrot.lane.b32.xlu0 %v211, 64
    %v227 = vpop.permute.xlu0 %226
    %228 = vrot.lane.b32.xlu0 %v213, 64
    %v229 = vpop.permute.xlu0 %228
    %230 = vrot.lane.b32.xlu0 %v215, 64
    %v231 = vpop.permute.xlu0 %230
    %s240 = scalar_lea.vmem [#allocation2], 32
    %241 = vst.msk [vmem:[%s240] sm:$0x3] %vm140, %v217
    %242 = vst.msk [vmem:[%s240 + $0x2] sm:$0x3] %vm140, %v219
    %243 = vst.msk [vmem:[%s240 + $0x4] sm:$0x3] %vm140, %v221
    %244 = vst.msk [vmem:[%s240 + $0x6] sm:$0x3] %vm140, %v223
    %245 = vst.msk [vmem:[%s240 + $0x8] sm:$0x3] %vm140, %v225
    %246 = vst.msk [vmem:[%s240 + $0xa] sm:$0x3] %vm140, %v227
    %247 = vst.msk [vmem:[%s240 + $0xc] sm:$0x3] %vm140, %v229
    %248 = vst.msk [vmem:[%s240 + $0xe] sm:$0x3] %vm140, %v231
    %249 = vst [vmem:[#allocation1] ss:$4 sm:$0xff] %v98
    %v250 = vld.sshfl [vmem:[#allocation1] sm:$0xff pattern:$0x73625140]
    %s251 = scalar_lea.vmem [#allocation1], 32
    %252 = vst [vmem:[%s251] ss:$4 sm:$0xff] %v128
    %v253 = vld.sshfl [vmem:[#allocation1 + $0x20] sm:$0xff pattern:$0x73625140]
    %254 = vst [vmem:[#allocation1] ss:$4 sm:$0xff] %v129
    %v255 = vld.sshfl [vmem:[#allocation1] sm:$0xff pattern:$0x73625140]
    %256 = vst [vmem:[%s251] ss:$4 sm:$0xff] %v130
    %v257 = vld.sshfl [vmem:[#allocation1 + $0x20] sm:$0xff pattern:$0x73625140]
    %258 = vst [vmem:[#allocation1] ss:$4 sm:$0xff] %v101
    %v259 = vld.sshfl [vmem:[#allocation1] sm:$0xff pattern:$0x73625140]
    %260 = vst [vmem:[%s251] ss:$4 sm:$0xff] %v131
    %v261 = vld.sshfl [vmem:[#allocation1 + $0x20] sm:$0xff pattern:$0x73625140]
    %262 = vst [vmem:[#allocation1] ss:$4 sm:$0xff] %v132
    %v263 = vld.sshfl [vmem:[#allocation1] sm:$0xff pattern:$0x73625140]
    %264 = vst [vmem:[%s251] ss:$4 sm:$0xff] %v133
    %v265 = vld.sshfl [vmem:[#allocation1 + $0x20] sm:$0xff pattern:$0x73625140]
    %266 = vrot.lane.b32.xlu0 %v250, 32
    %v267 = vpop.permute.xlu0 %266
    %268 = vrot.lane.b32.xlu0 %v253, 32
    %v269 = vpop.permute.xlu0 %268
    %270 = vrot.lane.b32.xlu0 %v255, 32
    %v271 = vpop.permute.xlu0 %270
    %272 = vrot.lane.b32.xlu0 %v257, 32
    %v273 = vpop.permute.xlu0 %272
    %274 = vrot.lane.b32.xlu0 %v259, 32
    %v275 = vpop.permute.xlu0 %274
    %276 = vrot.lane.b32.xlu0 %v261, 32
    %v277 = vpop.permute.xlu0 %276
    %278 = vrot.lane.b32.xlu0 %v263, 32
    %v279 = vpop.permute.xlu0 %278
    %280 = vrot.lane.b32.xlu0 %v265, 32
    %v281 = vpop.permute.xlu0 %280
    %s290 = scalar_lea.vmem [#allocation2], 48
    %291 = vst.msk [vmem:[%s290] sm:$0x3] %vm140, %v267
    %292 = vst.msk [vmem:[%s290 + $0x2] sm:$0x3] %vm140, %v269
    %293 = vst.msk [vmem:[%s290 + $0x4] sm:$0x3] %vm140, %v271
    %294 = vst.msk [vmem:[%s290 + $0x6] sm:$0x3] %vm140, %v273
    %295 = vst.msk [vmem:[%s290 + $0x8] sm:$0x3] %vm140, %v275
    %296 = vst.msk [vmem:[%s290 + $0xa] sm:$0x3] %vm140, %v277
    %297 = vst.msk [vmem:[%s290 + $0xc] sm:$0x3] %vm140, %v279
    %298 = vst.msk [vmem:[%s290 + $0xe] sm:$0x3] %vm140, %v281
    %v301 = vrot.slane %v121, 2
    %v302 = vrot.slane %v121, 4
    %v303 = vrot.slane %v121, 6
    %v304 = vrot.slane %v124, 2
    %v305 = vrot.slane %v124, 4
    %v306 = vrot.slane %v124, 6
    %s313 = scalar_lea.vmem [#allocation2], 64
    %314 = vst.msk [vmem:[%s313] sm:$0x3] %vm140, %v121
    %315 = vst.msk [vmem:[%s313 + $0x2] sm:$0x3] %vm140, %v301
    %316 = vst.msk [vmem:[%s313 + $0x4] sm:$0x3] %vm140, %v302
    %317 = vst.msk [vmem:[%s313 + $0x6] sm:$0x3] %vm140, %v303
    %318 = vst.msk [vmem:[%s313 + $0x8] sm:$0x3] %vm140, %v124
    %319 = vst.msk [vmem:[%s313 + $0xa] sm:$0x3] %vm140, %v304
    %320 = vst.msk [vmem:[%s313 + $0xc] sm:$0x3] %vm140, %v305
    %321 = vst.msk [vmem:[%s313 + $0xe] sm:$0x3] %vm140, %v306
    %322 = vst [vmem:[#allocation1] ss:$4 sm:$0xff] %v121
    %v323 = vld.sshfl [vmem:[#allocation1] sm:$0xff pattern:$0x73625140]
    %s324 = scalar_lea.vmem [#allocation1], 32
    %325 = vst [vmem:[%s324] ss:$4 sm:$0xff] %v301
    %v326 = vld.sshfl [vmem:[#allocation1 + $0x20] sm:$0xff pattern:$0x73625140]
    %327 = vst [vmem:[#allocation1] ss:$4 sm:$0xff] %v302
    %v328 = vld.sshfl [vmem:[#allocation1] sm:$0xff pattern:$0x73625140]
    %329 = vst [vmem:[%s324] ss:$4 sm:$0xff] %v303
    %v330 = vld.sshfl [vmem:[#allocation1 + $0x20] sm:$0xff pattern:$0x73625140]
    %331 = vst [vmem:[#allocation1] ss:$4 sm:$0xff] %v124
    %v332 = vld.sshfl [vmem:[#allocation1] sm:$0xff pattern:$0x73625140]
    %333 = vst [vmem:[%s324] ss:$4 sm:$0xff] %v304
    %v334 = vld.sshfl [vmem:[#allocation1 + $0x20] sm:$0xff pattern:$0x73625140]
    %335 = vst [vmem:[#allocation1] ss:$4 sm:$0xff] %v305
    %v336 = vld.sshfl [vmem:[#allocation1] sm:$0xff pattern:$0x73625140]
    %337 = vst [vmem:[%s324] ss:$4 sm:$0xff] %v306
    %v338 = vld.sshfl [vmem:[#allocation1 + $0x20] sm:$0xff pattern:$0x73625140]
    %339 = vrot.lane.b32.xlu0 %v323, 96
    %v340 = vpop.permute.xlu0 %339
    %341 = vrot.lane.b32.xlu0 %v326, 96
    %v342 = vpop.permute.xlu0 %341
    %343 = vrot.lane.b32.xlu0 %v328, 96
    %v344 = vpop.permute.xlu0 %343
    %345 = vrot.lane.b32.xlu0 %v330, 96
    %v346 = vpop.permute.xlu0 %345
    %347 = vrot.lane.b32.xlu0 %v332, 96
    %v348 = vpop.permute.xlu0 %347
    %349 = vrot.lane.b32.xlu0 %v334, 96
    %v350 = vpop.permute.xlu0 %349
    %351 = vrot.lane.b32.xlu0 %v336, 96
    %v352 = vpop.permute.xlu0 %351
    %353 = vrot.lane.b32.xlu0 %v338, 96
    %v354 = vpop.permute.xlu0 %353
    %s363 = scalar_lea.vmem [#allocation2], 80
    %364 = vst.msk [vmem:[%s363] sm:$0x3] %vm140, %v340
    %365 = vst.msk [vmem:[%s363 + $0x2] sm:$0x3] %vm140, %v342
    %366 = vst.msk [vmem:[%s363 + $0x4] sm:$0x3] %vm140, %v344
    %367 = vst.msk [vmem:[%s363 + $0x6] sm:$0x3] %vm140, %v346
    %368 = vst.msk [vmem:[%s363 + $0x8] sm:$0x3] %vm140, %v348
    %369 = vst.msk [vmem:[%s363 + $0xa] sm:$0x3] %vm140, %v350
    %370 = vst.msk [vmem:[%s363 + $0xc] sm:$0x3] %vm140, %v352
    %371 = vst.msk [vmem:[%s363 + $0xe] sm:$0x3] %vm140, %v354
    %v372 = vld [vmem:[%s3] sm:$0xff]
    %v373 = vld [vmem:[%s3 + $0x8] sm:$0xff]
    %v374 = vld [vmem:[%s3 + $0x10] sm:$0xff]
    %v375 = vld [vmem:[%s3 + $0x18] sm:$0xff]
    %v376 = vld [vmem:[%s4] sm:$0xff]
    %v377 = vld [vmem:[%s4 + $0x8] sm:$0xff]
    %v378 = vld [vmem:[%s4 + $0x10] sm:$0xff]
    %v379 = vld [vmem:[%s4 + $0x18] sm:$0xff]
    %v380 = vld [vmem:[%s5] sm:$0x1]
    %v382 = vperm.slane %v380, 0
    loop: start=0, step=1, limit=8
    $region34: #{encoder_forward.1} parent=1 // loop_pre_header
      _
    $region35: #{encoder_forward.1} parent=1 // loop_header
      %s384 = sphi 0, %s388
      %p385 = scmp.ge.s32.totalorder %s384, 8
      %v389 = vphi 0.0, %v476
      %v390 = vphi 0.0, %v516
    $region36: #{encoder_forward.1} parent=1 // loop_header_branch
      %387 = sbr.rel (%p385) target = $region40
    $region37: #{encoder_forward.1} parent=1 // loop_body
      %vm391 = vcmask 261120
      %v393 = vsel %vm391, %v389, 0
      %395 = vmatpush.msra.mxu0 0.0
      %396 = vmatpush.msra.mxu0 0.0
      %397 = vmatpush.msra.mxu0 0.0
      %398 = vmatpush.msra.mxu0 0.0
      %399 = vmatpush.msra.mxu0 0.0
      %400 = vmatpush.msra.mxu0 0.0
      %401 = vmatpush.msra.mxu0 0.0
      %402 = vmatpush.msra.mxu0 0.0
      %403 = vmatpush.msra.mxu0 0.0
      %404 = vmatpush.msra.mxu0 0.0
      %405 = vmatpush.msra.mxu0 0.0
      %406 = vmatpush.msra.mxu0 0.0
      %407 = vmatpush.msra.mxu0 %v375
      %408 = vmatpush.msra.mxu0 %v374
      %409 = vmatpush.msra.mxu0 %v373
      %410 = vmatpush.msra.mxu0 %v372
      %411 = vmatmul.f32.gmra.mxu0 %v393
      %v412 = vpop.f32.mrf.mxu0
      %v413 = vadd.f32 0.0, %v412
      %414 = vdwg.mxu0
      %v416 = vsel %vm391, %v390, 0
      %418 = vmatpush.msra.mxu0 0.0
      %419 = vmatpush.msra.mxu0 0.0
      %420 = vmatpush.msra.mxu0 0.0
      %421 = vmatpush.msra.mxu0 0.0
      %422 = vmatpush.msra.mxu0 0.0
      %423 = vmatpush.msra.mxu0 0.0
      %424 = vmatpush.msra.mxu0 0.0
      %425 = vmatpush.msra.mxu0 0.0
      %426 = vmatpush.msra.mxu0 0.0
      %427 = vmatpush.msra.mxu0 0.0
      %428 = vmatpush.msra.mxu0 0.0
      %429 = vmatpush.msra.mxu0 0.0
      %430 = vmatpush.msra.mxu0 %v379
      %431 = vmatpush.msra.mxu0 %v378
      %432 = vmatpush.msra.mxu0 %v377
      %433 = vmatpush.msra.mxu0 %v376
      %434 = vmatmul.f32.gmra.mxu0 %v416
      %v435 = vpop.f32.mrf.mxu0
      %v436 = vadd.f32 0.0, %v435
      %437 = vdwg.mxu0
      %s438 = smul.u32 %s384, 2
      %s439 = scalar_lea.vmem [#allocation2], %s438
      %v440 = vld [vmem:[%s439] sm:$0x3]
      %s441 = sadd.s32 %s384, 8
      %s442 = smul.u32 %s441, 2
      %s443 = scalar_lea.vmem [#allocation2], %s442
      %v444 = vld [vmem:[%s443] sm:$0x3]
      %s445 = sadd.s32 %s384, 16
      %s446 = smul.u32 %s445, 2
      %s447 = scalar_lea.vmem [#allocation2], %s446
      %v448 = vld [vmem:[%s447] sm:$0x3]
      %v449 = vadd.f32 %v440, %v413
      %v450 = vmul.f32 %v449, 0.5
      %v451 = vtanh.pop %v450
      %v452 = vmul.f32 %v451, 0.5
      %v453 = vadd.f32 %v452, 0.5
      %455 = vrot.lane.b32.xlu0 %v413, 96
      %v456 = vpop.permute.xlu0 %455
      %v458 = vadd.f32 %v444, %v456
      %v459 = vmul.f32 %v458, 0.5
      %v460 = vtanh.pop %v459
      %v461 = vmul.f32 %v460, 0.5
      %v462 = vadd.f32 %v461, 0.5
      %463 = vrot.lane.b32.xlu0 %v382, 64
      %v464 = vpop.permute.xlu0 %463
      %v466 = vadd.f32 %v413, %v464
      %468 = vrot.lane.b32.xlu0 %v466, 64
      %v469 = vpop.permute.xlu0 %468
      %v471 = vmul.f32 %v453, %v469
      %v472 = vadd.f32 %v448, %v471
      %v473 = vtanh.pop %v472
      %v474 = vsub.f32 %v389, %v473
      %v475 = vmul.f32 %v462, %v474
      %v476 = vadd.f32 %v473, %v475
      %s477 = ssub.s32 31, %s384
      %s478 = smul.u32 %s477, 2
      %s479 = scalar_lea.vmem [#allocation2], %s478
      %v480 = vld [vmem:[%s479] sm:$0x3]
      %s481 = ssub.s32 39, %s384
      %s482 = smul.u32 %s481, 2
      %s483 = scalar_lea.vmem [#allocation2], %s482
      %v484 = vld [vmem:[%s483] sm:$0x3]
      %s485 = ssub.s32 47, %s384
      %s486 = smul.u32 %s485, 2
      %s487 = scalar_lea.vmem [#allocation2], %s486
      %v488 = vld [vmem:[%s487] sm:$0x3]
      %v489 = vadd.f32 %v480, %v436
      %v490 = vmul.f32 %v489, 0.5
      %v491 = vtanh.pop %v490
      %v492 = vmul.f32 %v491, 0.5
      %v493 = vadd.f32 %v492, 0.5
      %495 = vrot.lane.b32.xlu0 %v436, 96
      %v496 = vpop.permute.xlu0 %495
      %v498 = vadd.f32 %v484, %v496
      %v499 = vmul.f32 %v498, 0.5
      %v500 = vtanh.pop %v499
      %v501 = vmul.f32 %v500, 0.5
      %v502 = vadd.f32 %v501, 0.5
      %503 = vrot.lane.b32.xlu0 %v382, 32
      %v504 = vpop.permute.xlu0 %503
      %v506 = vadd.f32 %v436, %v504
      %508 = vrot.lane.b32.xlu0 %v506, 64
      %v509 = vpop.permute.xlu0 %508
      %v511 = vmul.f32 %v493, %v509
      %v512 = vadd.f32 %v488, %v511
      %v513 = vtanh.pop %v512
      %v514 = vsub.f32 %v390, %v513
      %v515 = vmul.f32 %v502, %v514
      %v516 = vadd.f32 %v513, %v515
      %s517 = scalar_lea.vmem %s8, %s438
      %518 = vst.msk [vmem:[%s517] sm:$0x3] %vm140, %v476
      %s519 = ssub.s32 15, %s384
      %s520 = smul.u32 %s519, 2
      %s521 = scalar_lea.vmem %s8, %s520
      %522 = vst.msk [vmem:[%s521] sm:$0x3] %vm140, %v516
    $region38: #{encoder_forward.1} parent=1 // loop_footer
      %s388 = sadd.s32 1, %s384
    $region39: #{encoder_forward.1} parent=1 // loop_footer_branch
      %383 = sbr.rel target = $region35
    $region40: #{encoder_forward.1} parent=1 // loop_exit
      _
    %524 = vrot.lane.b32.xlu0 %v390, 32
    %v525 = vpop.permute.xlu0 %524
    %vm527 = vcmask 261120
    %v528 = vsel %vm527, %v389, %v525
    %v529 = vld [vmem:[%s6] sm:$0xff]
    %v530 = vld [vmem:[%s6 + $0x8] sm:$0xff]
    %v531 = vld [vmem:[%s6 + $0x10] sm:$0xff]
    %v532 = vld [vmem:[%s6 + $0x18] sm:$0xff]
    %v533 = vld [vmem:[%s6 + $0x20] sm:$0xff]
    %v534 = vld [vmem:[%s6 + $0x28] sm:$0xff]
    %v535 = vld [vmem:[%s6 + $0x30] sm:$0xff]
    %v536 = vld [vmem:[%s6 + $0x38] sm:$0xff]
    %v537 = vld [vmem:[%s7] sm:$0x1]
    %v539 = vperm.slane %v537, 0
    %vm541 = vcmask 523264
    %v543 = vsel %vm541, %v528, 0
    %545 = vmatpush.msra.mxu0 0.0
    %546 = vmatpush.msra.mxu0 0.0
    %547 = vmatpush.msra.mxu0 0.0
    %548 = vmatpush.msra.mxu0 0.0
    %549 = vmatpush.msra.mxu0 0.0
    %550 = vmatpush.msra.mxu0 0.0
    %551 = vmatpush.msra.mxu0 0.0
    %552 = vmatpush.msra.mxu0 0.0
    %553 = vmatpush.msra.mxu0 %v536
    %554 = vmatpush.msra.mxu0 %v535
    %555 = vmatpush.msra.mxu0 %v534
    %556 = vmatpush.msra.mxu0 %v533
    %557 = vmatpush.msra.mxu0 %v532
    %558 = vmatpush.msra.mxu0 %v531
    %559 = vmatpush.msra.mxu0 %v530
    %560 = vmatpush.msra.mxu0 %v529
    %561 = vmatmul.f32.gmra.mxu0 %v543
    %v562 = vpop.f32.mrf.mxu0
    %v563 = vadd.f32 %v539, %v562
    %564 = vdwg.mxu0
    %v565 = vtanh.pop %v563
    %566 = vst.msk [vmem:[#allocation3] sm:$0x3] %vm140, %v565
    // Predicated region
    $region41: #{encoder_forward.1} parent=1 // pred_check
      _
    $region42: #{encoder_forward.1} parent=1 // pred_check_branch
      %568 = sbr.rel (0) target = $region44
    $region43: #{encoder_forward.1} parent=1 // pred_region
      _
    $region44: #{encoder_forward.1} parent=1 // pred_fallthru
      _
    // Predicated region
    $region45: #{encoder_forward.1} parent=1 // pred_check
      _
    $region46: #{encoder_forward.1} parent=1 // pred_check_branch
      %570 = sbr.rel (0) target = $region48
    $region47: #{encoder_forward.1} parent=1 // pred_region
      %572 = vsyncadd [#allocation4], 0
      %s574 = sshll.u32 [#allocation3], 4
      %s575 = int_to_ptr.vmem [resolvable:$true] %s574
      %s576 = sshll.u32 %s9, 4
      %s577 = int_to_ptr.hbm [resolvable:$true] %s576
      %579 = dma.vmem_to_hbm [thread:$0]  %s575, 32, %s577, [#allocation4]
    $region48: #{encoder_forward.1} parent=1 // pred_fallthru
      _
    // Predicated region
    $region49: #{encoder_forward.1} parent=1 // pred_check
      _
    $region50: #{encoder_forward.1} parent=1 // pred_check_branch
      %581 = sbr.rel (0) target = $region52
    $region51: #{encoder_forward.1} parent=1 // pred_region
      _
    $region52: #{encoder_forward.1} parent=1 // pred_fallthru
      _
    // Predicated region
    $region53: #{encoder_forward.1} parent=1 // pred_check
      _
    $region54: #{encoder_forward.1} parent=1 // pred_check_branch
      %583 = sbr.rel (0) target = $region56
    $region55: #{encoder_forward.1} parent=1 // pred_region
      %585 = dma.done [#allocation4], 32
    $region56: #{encoder_forward.1} parent=1 // pred_fallthru
      _
    %586 = vsyncpa [#allocation4], 1

</llo_original>
